<compile_context>
chip_gen: v6e
topology: v6e:2x2x1
jax: 0.10.0
libtpu: 0.0.40
codegen_flags: <defaults>
</compile_context>

<pallas_src>
import functools

import jax
import jax.numpy as jnp
from jax import lax
from jax.experimental import pallas as pl
from jax.experimental.pallas import tpu as pltpu

MARGIN = 0.2


def _devise_loss_kernel(o_ref, twv_ref, w_ref, loss_ref, acc_ref, *,
                        total_b, num_classes, tb):
    i = pl.program_id(0)

    @pl.when(i == 0)
    def _init():
        acc_ref[0] = jnp.float32(0.0)

    o = o_ref[...].astype(jnp.float32)       # (TB, D)
    twv = twv_ref[...].astype(jnp.float32)   # (TB, D)
    w = w_ref[...].astype(jnp.float32)       # (Jpad, D), zero rows past J

    # true_distance: (TB, 1) -- VPU multiply + lane reduce.
    true_dist = jnp.sum(o * twv, axis=1, keepdims=True)

    # j_distance for every target class at once: (TB, Jpad) on the MXU.
    # Contract the last dim of both operands -> no transpose of w.
    j_dist = lax.dot_general(
        o, w,
        dimension_numbers=(((1,), (1,)), ((), ())),
        preferred_element_type=jnp.float32)

    hinge = jnp.maximum(MARGIN + true_dist - j_dist, 0.0)   # (TB, Jpad)

    # Mask padded class columns (zero rows in w would still give hinge=margin).
    col_ids = lax.broadcasted_iota(jnp.int32, hinge.shape, 1)
    hinge = jnp.where(col_ids < num_classes, hinge, 0.0)

    # Mask padded batch rows of the last (partial) tile.
    row_ids = i * tb + lax.broadcasted_iota(jnp.int32, hinge.shape, 0)
    hinge = jnp.where(row_ids < total_b, hinge, 0.0)

    acc_ref[0] = acc_ref[0] + jnp.sum(hinge)

    @pl.when(i == pl.num_programs(0) - 1)
    def _finalize():
        loss_ref[0] = acc_ref[0] / jnp.float32(total_b)


@functools.partial(jax.jit, static_argnames=("block_b",))
def devise_loss(outputs, target_wvs, target_class_wvs, *, block_b=256):
    """outputs: (B, D), target_wvs: (B, D), target_class_wvs: (J, D) -> scalar."""
    B, D = outputs.shape
    J, _ = target_class_wvs.shape

    # Batch tile: multiple of 8 sublanes, capped at block_b.
    tb = min(block_b, max(8, ((B + 7) // 8) * 8))
    b_pad = ((B + tb - 1) // tb) * tb
    # Class axis padded to a lane-dense multiple of 128 (zero rows).
    j_pad = max(128, ((J + 127) // 128) * 128)

    o = outputs.astype(jnp.float32)
    twv = target_wvs.astype(jnp.float32)
    w = target_class_wvs.astype(jnp.float32)
    if b_pad != B:
        o = jnp.pad(o, ((0, b_pad - B), (0, 0)))
        twv = jnp.pad(twv, ((0, b_pad - B), (0, 0)))
    if j_pad != J:
        w = jnp.pad(w, ((0, j_pad - J), (0, 0)))

    kernel = functools.partial(
        _devise_loss_kernel, total_b=B, num_classes=J, tb=tb)

    loss = pl.pallas_call(
        kernel,
        out_shape=jax.ShapeDtypeStruct((1,), jnp.float32),
        grid=(b_pad // tb,),
        in_specs=[
            pl.BlockSpec((tb, D), lambda i: (i, 0)),      # outputs tile
            pl.BlockSpec((tb, D), lambda i: (i, 0)),      # true-class wv tile
            pl.BlockSpec((j_pad, D), lambda i: (0, 0)),   # resident class wvs
        ],
        out_specs=pl.BlockSpec(memory_space=pltpu.MemorySpace.SMEM),
        scratch_shapes=[pltpu.SMEM((1,), jnp.float32)],
        compiler_params=pltpu.CompilerParams(
            dimension_semantics=("arbitrary",),
            vmem_limit_bytes=32 * 1024 * 1024),
    )(o, twv, w)
    return loss[0]


def devise_loss_reference(outputs, target_wvs, target_class_wvs):
    """Pure-JAX reference mirroring the PyTorch loop."""
    B = outputs.shape[0]
    true_dist = jnp.sum(outputs * target_wvs, axis=1)  # (B,)
    loss = 0.0
    for j in range(target_class_wvs.shape[0]):
        j_dist = jnp.sum(outputs * target_class_wvs[j][None, :], axis=1)
        loss = loss + jnp.sum(jnp.maximum(MARGIN + true_dist - j_dist, 0.0))
    return loss / B


if __name__ == "__main__":
    key = jax.random.PRNGKey(0)
    B, D = 10, 128         # batch (not sublane-aligned on purpose), embed dim
    NUM_CLASSES = 16       # total vocabulary of classes
    J = 8                  # number of target_classes iterated over in the loss

    k_out, k_wv, k_tgt = jax.random.split(key, 3)

    # Deterministic synthetic "word_vectors" table: one row per class name.
    word_vectors = jax.random.normal(k_wv, (NUM_CLASSES, D), dtype=jnp.float32)
    # self.classes: class index -> class name; here names are just row indices.
    classes = jnp.arange(NUM_CLASSES, dtype=jnp.int32)
    # self.target_classes: subset of class indices the loss loops over.
    target_classes = jnp.arange(J, dtype=jnp.int32)

    # Inputs to forward():
    outputs = jax.random.normal(k_out, (B, D), dtype=jnp.float32)
    targets = jax.random.randint(k_tgt, (B,), 0, NUM_CLASSES)   # unused by forward
    target_wvs = word_vectors[targets]                          # (B, D)

    # Glue: gather the (J, D) matrix of target-class word vectors (the
    # `self.word_vectors[self.classes[j]]` lookups), then run the kernel.
    target_class_wvs = word_vectors[classes[target_classes]]    # (J, D)

    loss = devise_loss(outputs, target_wvs, target_class_wvs)
    jax.block_until_ready(loss)

    ref = devise_loss_reference(outputs, target_wvs, target_class_wvs)
    assert jnp.allclose(loss, ref, rtol=1e-5, atol=1e-5), (loss, ref)

    print("KERNEL_OK")
</pallas_src>

<mosaic_0001>
module attributes {stable_mosaic.version = 11 : i64} {
  func.func @_devise_loss_kernel(%arg0: i32, %arg1: memref<16x128xf32, #tpu.memory_space<vmem>>, %arg2: memref<16x128xf32, #tpu.memory_space<vmem>>, %arg3: memref<128x128xf32, #tpu.memory_space<vmem>>, %arg4: memref<1xf32, #tpu.memory_space<smem>>, %arg5: memref<1xf32, #tpu.memory_space<smem>>) attributes {dimension_semantics = [#tpu.dimension_semantics<arbitrary>], iteration_bounds = array<i64: 1>, scalar_prefetch = 0 : i64, scratch_operands = 1 : i64, tpu.core_type = #tpu.core_type<tc>, window_params = [{transform_indices = @transform_0, window_bounds = array<i64: 16, 128>}, {transform_indices = @transform_1, window_bounds = array<i64: 16, 128>}, {pipeline_mode = #tpu.pipeline_mode<synchronous>, transform_indices = @transform_2, window_bounds = array<i64: 128, 128>}, {transform_indices = @transform_3, window_bounds = array<i64: 1>}]} {
    %c0_i32 = arith.constant 0 : i32
    %0 = arith.cmpi eq, %arg0, %c0_i32 : i32
    %1 = arith.extui %0 : i1 to i32
    %c0_i32_0 = arith.constant 0 : i32
    %2 = arith.cmpi ne, %1, %c0_i32_0 : i32
    scf.if %2 {
      %cst_16 = arith.constant 0.000000e+00 : f32
      %c0_17 = arith.constant 0 : index
      %39 = memref.load %arg5[%c0_17] : memref<1xf32, #tpu.memory_space<smem>>
      memref.store %cst_16, %arg5[%c0_17] : memref<1xf32, #tpu.memory_space<smem>>
    } else {
    }
    %c0 = arith.constant 0 : index
    %c0_1 = arith.constant 0 : index
    %3 = vector.load %arg1[%c0, %c0_1] : memref<16x128xf32, #tpu.memory_space<vmem>>, vector<16x128xf32>
    %c0_2 = arith.constant 0 : index
    %c0_3 = arith.constant 0 : index
    %4 = vector.load %arg2[%c0_2, %c0_3] : memref<16x128xf32, #tpu.memory_space<vmem>>, vector<16x128xf32>
    %c0_4 = arith.constant 0 : index
    %c0_5 = arith.constant 0 : index
    %5 = vector.load %arg3[%c0_4, %c0_5] : memref<128x128xf32, #tpu.memory_space<vmem>>, vector<128x128xf32>
    %6 = arith.mulf %3, %4 : vector<16x128xf32>
    %cst = arith.constant dense<0.000000e+00> : vector<16xf32>
    %7 = vector.multi_reduction <add>, %6, %cst [1] : vector<16x128xf32> to vector<16xf32>
    %8 = vector.shape_cast %7 : vector<16xf32> to vector<16x1xf32>
    %cst_6 = arith.constant dense<0.000000e+00> : vector<16x128xf32>
    %9 = tpu.matmul %3, %5, %cst_6 {dimension_numbers = #tpu.dot_dimension_numbers<[1], [1], [0], [0], [0, 0, 1, 0], [], []>} : vector<16x128xf32>, vector<128x128xf32>, vector<16x128xf32> -> vector<16x128xf32>
    %cst_7 = arith.constant 2.000000e-01 : f32
    %10 = vector.broadcast %cst_7 : f32 to vector<16x1xf32>
    %11 = arith.addf %10, %8 : vector<16x1xf32>
    %12 = vector.broadcast %11 : vector<16x1xf32> to vector<16x128xf32>
    %13 = arith.subf %12, %9 : vector<16x128xf32>
    %cst_8 = arith.constant 0.000000e+00 : f32
    %14 = vector.broadcast %cst_8 : f32 to vector<16x128xf32>
    %15 = arith.maximumf %13, %14 : vector<16x128xf32>
    %16 = tpu.iota {dimensions = array<i32: 1>} : vector<16x128xi32>
    %c8_i32 = arith.constant 8 : i32
    %17 = vector.broadcast %c8_i32 : i32 to vector<16x128xi32>
    %18 = arith.cmpi slt, %16, %17 : vector<16x128xi32>
    %cst_9 = arith.constant 0.000000e+00 : f32
    %19 = vector.broadcast %cst_9 : f32 to vector<16x128xf32>
    %20 = arith.select %18, %15, %19 : vector<16x128xi1>, vector<16x128xf32>
    %c16_i32 = arith.constant 16 : i32
    %21 = arith.muli %arg0, %c16_i32 : i32
    %22 = tpu.iota {dimensions = array<i32: 0>} : vector<16x128xi32>
    %23 = vector.broadcast %21 : i32 to vector<16x128xi32>
    %24 = arith.addi %23, %22 : vector<16x128xi32>
    %c10_i32 = arith.constant 10 : i32
    %25 = vector.broadcast %c10_i32 : i32 to vector<16x128xi32>
    %26 = arith.cmpi slt, %24, %25 : vector<16x128xi32>
    %cst_10 = arith.constant 0.000000e+00 : f32
    %27 = vector.broadcast %cst_10 : f32 to vector<16x128xf32>
    %28 = arith.select %26, %20, %27 : vector<16x128xi1>, vector<16x128xf32>
    %c0_11 = arith.constant 0 : index
    %29 = memref.load %arg5[%c0_11] : memref<1xf32, #tpu.memory_space<smem>>
    %30 = vector.shape_cast %28 : vector<16x128xf32> to vector<1x16x128xf32>
    %cst_12 = arith.constant dense<0.000000e+00> : vector<1xf32>
    %31 = vector.multi_reduction <add>, %30, %cst_12 [1, 2] : vector<1x16x128xf32> to vector<1xf32>
    %32 = vector.shape_cast %31 : vector<1xf32> to vector<1x1x1xf32>
    %33 = vector.extract %32[0, 0, 0] : f32 from vector<1x1x1xf32>
    %34 = arith.addf %29, %33 : f32
    %c0_13 = arith.constant 0 : index
    %35 = memref.load %arg5[%c0_13] : memref<1xf32, #tpu.memory_space<smem>>
    memref.store %34, %arg5[%c0_13] : memref<1xf32, #tpu.memory_space<smem>>
    %c0_i32_14 = arith.constant 0 : i32
    %36 = arith.cmpi eq, %arg0, %c0_i32_14 : i32
    %37 = arith.extui %36 : i1 to i32
    %c0_i32_15 = arith.constant 0 : i32
    %38 = arith.cmpi ne, %37, %c0_i32_15 : i32
    scf.if %38 {
      %c0_16 = arith.constant 0 : index
      %39 = memref.load %arg5[%c0_16] : memref<1xf32, #tpu.memory_space<smem>>
      %cst_17 = arith.constant 1.000000e+01 : f32
      %40 = arith.divf %39, %cst_17 : f32
      %c0_18 = arith.constant 0 : index
      %41 = memref.load %arg4[%c0_18] : memref<1xf32, #tpu.memory_space<smem>>
      memref.store %40, %arg4[%c0_18] : memref<1xf32, #tpu.memory_space<smem>>
    } else {
    }
    return
  }
  func.func @transform_0(%arg0: i32) -> (i32, i32) {
    %c0_i32 = arith.constant 0 : i32
    %c0_i32_0 = arith.constant 0 : i32
    return %arg0, %c0_i32 : i32, i32
  }
  func.func @transform_1(%arg0: i32) -> (i32, i32) {
    %c0_i32 = arith.constant 0 : i32
    %c0_i32_0 = arith.constant 0 : i32
    return %arg0, %c0_i32 : i32, i32
  }
  func.func @transform_2(%arg0: i32) -> (i32, i32) {
    %c0_i32 = arith.constant 0 : i32
    %c0_i32_0 = arith.constant 0 : i32
    %c0_i32_1 = arith.constant 0 : i32
    return %c0_i32, %c0_i32_0 : i32, i32
  }
  func.func @transform_3(%arg0: i32) -> i32 {
    %c0_i32 = arith.constant 0 : i32
    %c0_i32_0 = arith.constant 0 : i32
    return %c0_i32 : i32
  }
}

</mosaic_0001>

<llo_original>
// kernel: devise_loss.1
$region0: #{devise_loss.1}
  #allocation0 [shape = 'u32[]', space=smem, size = 0x4, offset = 0x4, fixed_abs, tag = 'smem constant byte address 0x4 - core index']
  #allocation1 [shape = 'u32[144,128]{1,0:T(1,128)}', space=vmem, size = 0x12000, scoped, tag = 'internal scratch']
  #allocation2 [shape = 'f32[1]{0:T(128)}', space=smem, size = 0x200, scoped, tag = 'scratch operand']
  %s0 = inlined_call_operand.vmem [shape: f32[16,128], index: 0, kind: input, shape index: {}]
  %s1 = inlined_call_operand.vmem [shape: f32[16,128], index: 1, kind: input, shape index: {}]
  %s2 = inlined_call_operand.vmem [shape: f32[128,128], index: 2, kind: input, shape index: {}]
  %s3 = inlined_call_operand.hbm [shape: f32[1], index: 3, kind: output, shape index: {}]
  %s4 = sld [smem:[#allocation0]]
  $region30: #{devise_loss.1} parent=0
    _
  %s6 = ssub.s32 1, %s4
  %s7 = scalar_select 0, %s6, %s4
  $region1: #{devise_loss.1} parent=0
    #allocation3 [shape = 'u8[512]{0}', space=smem, size = 0x200, scoped, tag = 'output window, operand 0, single buffered']
    #allocation4 [shape = 's32[1]{0}', space=sflag, size = 0x4, scoped, tag = 'scoped memory for devise_loss.1']
    %8 = vsyncpa [#allocation4], 0
    // Predicated region
    $region2: #{devise_loss.1} parent=1 // pred_check
      _
    $region3: #{devise_loss.1} parent=1 // pred_check_branch
      %10 = sbr.rel (0) target = $region5
    $region4: #{devise_loss.1} parent=1 // pred_region
      _
    $region5: #{devise_loss.1} parent=1 // pred_fallthru
      _
    // Predicated region
    $region6: #{devise_loss.1} parent=1 // pred_check
      _
    $region7: #{devise_loss.1} parent=1 // pred_check_branch
      %12 = sbr.rel (0) target = $region9
    $region8: #{devise_loss.1} parent=1 // pred_region
      _
    $region9: #{devise_loss.1} parent=1 // pred_fallthru
      _
    // Predicated region
    $region10: #{devise_loss.1} parent=1 // pred_check
      _
    $region11: #{devise_loss.1} parent=1 // pred_check_branch
      %14 = sbr.rel (0) target = $region13
    $region12: #{devise_loss.1} parent=1 // pred_region
      _
    $region13: #{devise_loss.1} parent=1 // pred_fallthru
      _
    %p15 = scmp.eq.s32.totalorder 0, 0
    // Predicated region
    $region14: #{devise_loss.1} parent=1 // pred_check
      %p16 = pneg %p15
    $region15: #{devise_loss.1} parent=1 // pred_check_branch
      %18 = sbr.rel (%p16) target = $region17
    $region16: #{devise_loss.1} parent=1 // pred_region
      %s19 = scalar_lea.smem [#allocation2], 0
      %20 = sst [smem:[%s19]] 0.0
    $region17: #{devise_loss.1} parent=1 // pred_fallthru
      _
    %v21 = vld [vmem:[%s0] sm:$0xff]
    %v22 = vld [vmem:[%s0 + $0x8] sm:$0xff]
    %v23 = vld [vmem:[%s1] sm:$0xff]
    %v24 = vld [vmem:[%s1 + $0x8] sm:$0xff]
    %v25 = vld [vmem:[%s2] sm:$0xff]
    %v26 = vld [vmem:[%s2 + $0x8] sm:$0xff]
    %v27 = vld [vmem:[%s2 + $0x10] sm:$0xff]
    %v28 = vld [vmem:[%s2 + $0x18] sm:$0xff]
    %v29 = vld [vmem:[%s2 + $0x20] sm:$0xff]
    %v30 = vld [vmem:[%s2 + $0x28] sm:$0xff]
    %v31 = vld [vmem:[%s2 + $0x30] sm:$0xff]
    %v32 = vld [vmem:[%s2 + $0x38] sm:$0xff]
    %v33 = vld [vmem:[%s2 + $0x40] sm:$0xff]
    %v34 = vld [vmem:[%s2 + $0x48] sm:$0xff]
    %v35 = vld [vmem:[%s2 + $0x50] sm:$0xff]
    %v36 = vld [vmem:[%s2 + $0x58] sm:$0xff]
    %v37 = vld [vmem:[%s2 + $0x60] sm:$0xff]
    %v38 = vld [vmem:[%s2 + $0x68] sm:$0xff]
    %v39 = vld [vmem:[%s2 + $0x70] sm:$0xff]
    %v40 = vld [vmem:[%s2 + $0x78] sm:$0xff]
    %v41 = vmul.f32 %v21, %v23
    %v42 = vmul.f32 %v22, %v24
    %43 = vadd.xlane.f32.xlu0 %v41
    %v44 = vpop.xlane.xlu0 %43
    %45 = vadd.xlane.f32.xlu0 %v42
    %v46 = vpop.xlane.xlu0 %45
    %47 = vmatprep.subr.mxu0 0.0
    %48 = vmatpush1.xpose.msra.mxu0 %v40
    %49 = vmatprep.subr.mxu0 0.0
    %50 = vmatpush1.xpose.msra.mxu0 %v39
    %51 = vmatprep.subr.mxu0 0.0
    %52 = vmatpush1.xpose.msra.mxu0 %v38
    %53 = vmatprep.subr.mxu0 0.0
    %54 = vmatpush1.xpose.msra.mxu0 %v37
    %55 = vmatprep.subr.mxu0 0.0
    %56 = vmatpush1.xpose.msra.mxu0 %v36
    %57 = vmatprep.subr.mxu0 0.0
    %58 = vmatpush1.xpose.msra.mxu0 %v35
    %59 = vmatprep.subr.mxu0 0.0
    %60 = vmatpush1.xpose.msra.mxu0 %v34
    %61 = vmatprep.subr.mxu0 0.0
    %62 = vmatpush1.xpose.msra.mxu0 %v33
    %63 = vmatprep.subr.mxu0 0.0
    %64 = vmatpush1.xpose.msra.mxu0 %v32
    %65 = vmatprep.subr.mxu0 0.0
    %66 = vmatpush1.xpose.msra.mxu0 %v31
    %67 = vmatprep.subr.mxu0 0.0
    %68 = vmatpush1.xpose.msra.mxu0 %v30
    %69 = vmatprep.subr.mxu0 0.0
    %70 = vmatpush1.xpose.msra.mxu0 %v29
    %71 = vmatprep.subr.mxu0 0.0
    %72 = vmatpush1.xpose.msra.mxu0 %v28
    %73 = vmatprep.subr.mxu0 0.0
    %74 = vmatpush1.xpose.msra.mxu0 %v27
    %75 = vmatprep.subr.mxu0 0.0
    %76 = vmatpush1.xpose.msra.mxu0 %v26
    %77 = vmatprep.subr.mxu0 0.0
    %78 = vmatpush1.xpose.msra.mxu0 %v25
    %79 = vmatprep.subr.mxu0 0.0
    %80 = vmatpush2.xpose.msra.mxu0 0.0
    %81 = vmatprep.subr.mxu0 0.0
    %82 = vmatpush2.xpose.msra.mxu0 0.0
    %83 = vmatprep.subr.mxu0 0.0
    %84 = vmatpush2.xpose.msra.mxu0 0.0
    %85 = vmatprep.subr.mxu0 0.0
    %86 = vmatpush2.xpose.msra.mxu0 0.0
    %87 = vmatprep.subr.mxu0 0.0
    %88 = vmatpush2.xpose.msra.mxu0 0.0
    %89 = vmatprep.subr.mxu0 0.0
    %90 = vmatpush2.xpose.msra.mxu0 0.0
    %91 = vmatprep.subr.mxu0 0.0
    %92 = vmatpush2.xpose.msra.mxu0 0.0
    %93 = vmatprep.subr.mxu0 0.0
    %94 = vmatpush2.xpose.msra.mxu0 0.0
    %95 = vmatprep.subr.mxu0 0.0
    %96 = vmatpush2.xpose.msra.mxu0 0.0
    %97 = vmatprep.subr.mxu0 0.0
    %98 = vmatpush2.xpose.msra.mxu0 0.0
    %99 = vmatprep.subr.mxu0 0.0
    %100 = vmatpush2.xpose.msra.mxu0 0.0
    %101 = vmatprep.subr.mxu0 0.0
    %102 = vmatpush2.xpose.msra.mxu0 0.0
    %103 = vmatprep.subr.mxu0 0.0
    %104 = vmatpush2.xpose.msra.mxu0 0.0
    %105 = vmatprep.subr.mxu0 0.0
    %106 = vmatpush2.xpose.msra.mxu0 0.0
    %107 = vmatprep.subr.mxu0 0.0
    %108 = vmatpush2.xpose.msra.mxu0 0.0
    %109 = vmatprep.subr.mxu0 0.0
    %110 = vmatpush2.xpose.msra.mxu0 0.0
    %111 = vmatprep.mubr.f32.mxu0 0.0
    %112 = vmatmul.mubr.f32.gmra.mxu0 %v21
    %v113 = vpop.f32.mrf.mxu0
    %v114 = vadd.f32 0.0, %v113
    %v115 = vpop.f32.mrf.mxu0
    %116 = vmatprep.mubr.f32.mxu0 0.0
    %117 = vmatmul.mubr.f32.gmra.mxu0 %v22
    %v118 = vpop.f32.mrf.mxu0
    %v119 = vadd.f32 0.0, %v118
    %v120 = vpop.f32.mrf.mxu0
    %121 = vdwg.mxu0
    %v122 = vadd.f32 %v44, 0.2
    %v123 = vadd.f32 %v46, 0.2
    %v124 = vsub.f32 %v122, %v114
    %v125 = vsub.f32 %v123, %v119
    %v126 = vmax.f32 %v124, 0.0
    %v127 = vmax.f32 %v125, 0.0
    %v128 = vlaneseq
    %v129 = vand.u32 %v128, 127
    %vm130 = vcmp.lt.s32.totalorder %v129, 8
    %v131 = vsel %vm130, %v126, 0.0
    %v132 = vsel %vm130, %v127, 0.0
    %s133 = smul.u32 0, 16
    %v134 = vlaneseq
    %v135 = vshrl.u32 %v134, 7
    %v136 = vadd.s32 %v135, 8
    %v137 = vstv %s133
    %v138 = vadd.s32 %v137, %v135
    %v139 = vadd.s32 %v137, %v136
    %vm140 = vcmp.lt.s32.totalorder %v138, 10
    %vm141 = vcmp.lt.s32.totalorder %v139, 10
    %v142 = vsel %vm140, %v131, 0.0
    %v143 = vsel %vm141, %v132, 0.0
    %s144 = sld [smem:[#allocation2]]
    %v145 = vadd.f32 %v142, %v143
    %146 = vadd.xlane.f32.xlu0 %v145
    %v147 = vpop.xlane.xlu0 %146
    %v148 = vrot.slane %v147, 4
    %v149 = vadd.f32 %v147, %v148
    %v150 = vrot.slane %v149, 2
    %v151 = vadd.f32 %v149, %v150
    %v152 = vrot.slane %v151, 1
    %v153 = vadd.f32 %v151, %v152
    %s154 = vtos %v153
    %s155 = sadd.f32 %s144, %s154
    %s156 = scalar_lea.smem [#allocation2], 0
    %157 = sst [smem:[%s156]] %s155
    // Predicated region
    $region18: #{devise_loss.1} parent=1 // pred_check
      %p158 = pneg %p15
    $region19: #{devise_loss.1} parent=1 // pred_check_branch
      %160 = sbr.rel (%p158) target = $region21
    $region20: #{devise_loss.1} parent=1 // pred_region
      %s161 = sld [smem:[#allocation2]]
      %v162 = vrcp.pop 10.0
      %s163 = vtos %v162
      %s164 = smul.f32 %s161, %s163
      %s165 = scalar_lea.smem [#allocation3], 0
      %166 = sst [smem:[%s165]] %s164
    $region21: #{devise_loss.1} parent=1 // pred_fallthru
      _
    // Predicated region
    $region22: #{devise_loss.1} parent=1 // pred_check
      _
    $region23: #{devise_loss.1} parent=1 // pred_check_branch
      %168 = sbr.rel (0) target = $region25
    $region24: #{devise_loss.1} parent=1 // pred_region
      %s170 = ssub.s32 16, 16
      %171 = vsyncadd [#allocation4], %s170
      %174 = dma.smem_to_hbm [#allocation3], 16, %s3, [#allocation4]
    $region25: #{devise_loss.1} parent=1 // pred_fallthru
      _
    // Predicated region
    $region26: #{devise_loss.1} parent=1 // pred_check
      _
    $region27: #{devise_loss.1} parent=1 // pred_check_branch
      %176 = sbr.rel (0) target = $region29
    $region28: #{devise_loss.1} parent=1 // pred_region
      %177 = dma.done [#allocation4], 16
    $region29: #{devise_loss.1} parent=1 // pred_fallthru
      _
    %178 = sfence
    %179 = vsyncpa [#allocation4], 1

</llo_original>
